<compile_context>
chip_gen: v5e
topology: v5e:2x2
jax: 0.10.0
libtpu: 0.0.40
codegen_flags: <defaults>
</compile_context>

<pallas_src>
import functools

import jax
import jax.numpy as jnp
from jax import lax
from jax.experimental import pallas as pl
from jax.experimental.pallas import tpu as pltpu


def _round_up(x, m):
    return ((x + m - 1) // m) * m


def graph_block_tiles(n, *, tm_max=1024, tk_max=2048):
    """Row/reduction tile sizes and padded dims for n graph nodes."""
    tm = min(tm_max, _round_up(n, 16))    # sublane axis of the bf16 A tile
    tk = min(tk_max, _round_up(n, 128))   # lane axis of A / sublane axis of XW
    return tm, tk, _round_up(n, tm), _round_up(n, tk)


# ---------------------------------------------------------------------------
# Phase 1: tiled AGG = A_hat @ XW  (bf16 MXU operands, f32 accumulation),
# plus masked, centered per-row-tile BatchNorm partial statistics.
# ---------------------------------------------------------------------------
def agg_stats_kernel(a_ref, xw_ref, agg_ref, stats_ref, *, n_rows, tm):
    m = pl.program_id(0)
    k = pl.program_id(1)

    @pl.when(k == 0)
    def _():
        agg_ref[...] = jnp.zeros_like(agg_ref)

    # The AGG output block is resident across the k (reduction) axis -> use it
    # directly as the accumulator (no VMEM scratch, no epilogue matmul).
    agg_ref[...] += jnp.dot(a_ref[...], xw_ref[...],
                            preferred_element_type=jnp.float32)

    @pl.when(k == pl.num_programs(1) - 1)
    def _():
        agg = agg_ref[...]
        # Padded rows of A_hat are all-zero -> those AGG rows are exactly 0,
        # so the plain column sum already equals the sum over *valid* rows.
        row = lax.broadcasted_iota(jnp.int32, (tm, 1), 0)
        valid = (m * tm + row) < n_rows
        cnt = jnp.minimum(n_rows - m * tm, tm).astype(jnp.float32)
        ssum = jnp.sum(agg, axis=0, keepdims=True)           # (1, C_pad)
        mu = ssum / cnt                                      # per-tile mean
        centered = jnp.where(valid, agg - mu, 0.0)           # mask padded rows
        m2 = jnp.sum(centered * centered, axis=0, keepdims=True)
        rid = lax.broadcasted_iota(jnp.int32, stats_ref.shape, 0)
        stats_ref[...] = (jnp.where(rid == 0, ssum, 0.0)
                          + jnp.where(rid == 1, m2, 0.0))


# ---------------------------------------------------------------------------
# Phase 2: lane-dense fused affine (folded BatchNorm) + ReLU.
# ---------------------------------------------------------------------------
def bn_relu_kernel(agg_ref, scale_ref, shift_ref, o_ref):
    o_ref[...] = jnp.maximum(
        agg_ref[...] * scale_ref[...] + shift_ref[...], 0.0
    ).astype(o_ref.dtype)


def graph_block_pallas(a_hat, x, weight, bias, gamma, beta, *, eps=1e-5,
                       tm_max=1024, tk_max=2048):
    # Training-mode BatchNorm subtracts the batch mean right after the conv,
    # so the per-channel conv bias cancels exactly -> drop it from the kernel.
    del bias

    n, c_in = x.shape
    c_out = weight.shape[1]
    f32 = jnp.float32

    tm, tk, n_pad_m, n_pad_k = graph_block_tiles(n, tm_max=tm_max,
                                                 tk_max=tk_max)
    n_m, n_k = n_pad_m // tm, n_pad_k // tk
    c_pad = _round_up(c_out, 128)            # lane-dense output channels

    # XW once in f32 (tiny matmul), then pad + cast to bf16 for the MXU RHS.
    xw = jnp.dot(x, weight, preferred_element_type=f32,
                 precision=lax.Precision.HIGHEST)
    xw_p = (jnp.zeros((n_pad_k, c_pad), f32).at[:n, :c_out].set(xw)
            .astype(jnp.bfloat16))

    # A_hat: prefer an already-padded bf16 matrix produced upstream (no extra
    # N^2 pad+cast pass); otherwise fall back to pad + cast here.
    if a_hat.shape == (n_pad_m, n_pad_k) and a_hat.dtype == jnp.bfloat16:
        a_p = a_hat
    else:
        a_p = (jnp.zeros((n_pad_m, n_pad_k), f32).at[:n, :n]
               .set(a_hat.astype(f32)).astype(jnp.bfloat16))

    g_p = jnp.zeros((c_pad,), f32).at[:c_out].set(gamma.reshape(-1))
    b_p = jnp.zeros((c_pad,), f32).at[:c_out].set(beta.reshape(-1))

    agg, stats = pl.pallas_call(
        functools.partial(agg_stats_kernel, n_rows=n, tm=tm),
        out_shape=(jax.ShapeDtypeStruct((n_pad_m, c_pad), f32),
                   jax.ShapeDtypeStruct((8 * n_m, c_pad), f32)),
        grid_spec=pltpu.PrefetchScalarGridSpec(
            num_scalar_prefetch=0,
            grid=(n_m, n_k),
            in_specs=[
                pl.BlockSpec((tm, tk), lambda m, k: (m, k)),        # A_hat bf16
                pl.BlockSpec((tk, c_pad), lambda m, k: (k, 0)),     # XW bf16
            ],
            out_specs=[
                pl.BlockSpec((tm, c_pad), lambda m, k: (m, 0)),     # AGG f32
                pl.BlockSpec((8, c_pad), lambda m, k: (m, 0)),      # stats
            ],
        ),
        compiler_params=pltpu.CompilerParams(
            dimension_semantics=("parallel", "arbitrary"),
            vmem_limit_bytes=32 * 1024 * 1024),
    )(a_p, xw_p)

    # Chan-style merge of centered per-tile partials -> exact batch mean/var
    # (no E[x^2] - E[x]^2 cancellation).  Tiny (n_m x c_pad) plain-JAX reduce.
    st = stats.reshape(n_m, 8, c_pad)
    sums = st[:, 0, :]                                    # (n_m, c_pad)
    m2s = st[:, 1, :]
    counts = jnp.minimum(n - jnp.arange(n_m) * tm, tm).astype(f32)
    mean = jnp.sum(sums, axis=0) / n
    mu_t = sums / counts[:, None]
    var = (jnp.sum(m2s, axis=0)
           + jnp.sum(counts[:, None] * (mu_t - mean) ** 2, axis=0)) / n
    scale = (g_p * lax.rsqrt(var + eps)).reshape(1, c_pad)
    shift = (b_p - mean * scale[0]).reshape(1, c_pad)

    # Phase 2 row tile decoupled from phase-1 tm (memory-bound elementwise).
    tm2 = tm
    for mult in (8, 4, 2):
        if n_m % mult == 0 and tm * mult <= 2048:
            tm2 = tm * mult
            break

    out = pl.pallas_call(
        bn_relu_kernel,
        out_shape=jax.ShapeDtypeStruct((n_pad_m, c_pad), f32),
        grid_spec=pltpu.PrefetchScalarGridSpec(
            num_scalar_prefetch=0,
            grid=(n_pad_m // tm2,),
            in_specs=[
                pl.BlockSpec((tm2, c_pad), lambda m: (m, 0)),
                pl.BlockSpec((1, c_pad), lambda m: (0, 0)),
                pl.BlockSpec((1, c_pad), lambda m: (0, 0)),
            ],
            out_specs=pl.BlockSpec((tm2, c_pad), lambda m: (m, 0)),
        ),
        compiler_params=pltpu.CompilerParams(
            dimension_semantics=("parallel",)),
    )(agg, scale, shift)

    return out[:n, :c_out]


def gcn_normalized_adjacency(edge_index, edge_weight, num_nodes, *,
                             pad_rows=None, pad_cols=None,
                             dtype=jnp.bfloat16):
    """Plain-JAX glue: dense D^-1/2 (A + I) D^-1/2 written straight into a
    zero-padded (pad_rows, pad_cols) matrix in `dtype`, so the kernel path
    never re-reads N^2 f32 bytes just to pad/cast.

    edge_index: int32 [2, E] (row=source, col=target), edge_weight: f32 [E].
    A_hat[target, source] = normalized weight, so aggregation at each target
    node is A_hat @ X (matches PyG GCNConv, add_self_loops=True, normalize=True).
    """
    pr = num_nodes if pad_rows is None else pad_rows
    pc = num_nodes if pad_cols is None else pad_cols
    row, col = edge_index[0], edge_index[1]
    loop = jnp.arange(num_nodes, dtype=edge_index.dtype)
    row = jnp.concatenate([row, loop])
    col = jnp.concatenate([col, loop])
    ew = jnp.concatenate(
        [edge_weight, jnp.ones((num_nodes,), dtype=edge_weight.dtype)])
    deg = jnp.zeros((num_nodes,), dtype=jnp.float32).at[col].add(ew)
    deg_inv_sqrt = jnp.where(deg > 0, lax.rsqrt(deg), 0.0)
    norm = deg_inv_sqrt[row] * ew * deg_inv_sqrt[col]
    a_hat = jnp.zeros((pr, pc), dtype=jnp.float32).at[col, row].add(norm)
    return a_hat.astype(dtype)


def reference_graph_block(a_hat, xw, bias, gamma, beta, eps=1e-5):
    hp = lax.Precision.HIGHEST
    h = jnp.dot(a_hat, xw, precision=hp) + bias
    mean = h.mean(axis=0, keepdims=True)
    var = ((h - mean) ** 2).mean(axis=0, keepdims=True)
    bn = (h - mean) / jnp.sqrt(var + eps) * gamma + beta
    return jnp.maximum(bn, 0.0)


if __name__ == "__main__":
    key = jax.random.PRNGKey(0)
    k_x, k_w, k_b, k_g, k_be, k_src, k_dst, k_ew = jax.random.split(key, 8)

    N = 16          # nodes
    C_IN = 8        # nc_input
    C_OUT = 32      # nc_output
    E = 48          # edges

    x = jax.random.normal(k_x, (N, C_IN), dtype=jnp.float32)
    src = jax.random.randint(k_src, (E,), 0, N, dtype=jnp.int32)
    dst = jax.random.randint(k_dst, (E,), 0, N, dtype=jnp.int32)
    edge_index = jnp.stack([src, dst], axis=0)
    edge_weight = jax.random.uniform(k_ew, (E,), dtype=jnp.float32) + 0.1

    # GCNConv linear weight, *nonzero* conv bias (to demonstrate it is exactly
    # cancelled by training-mode BN), non-trivial BN gamma/beta.
    glorot = (6.0 / (C_IN + C_OUT)) ** 0.5
    weight = jax.random.uniform(k_w, (C_IN, C_OUT), minval=-glorot,
                                maxval=glorot, dtype=jnp.float32)
    bias = 0.1 * jax.random.normal(k_b, (1, C_OUT), dtype=jnp.float32)
    gamma = 1.0 + 0.1 * jax.random.normal(k_g, (C_OUT,), dtype=jnp.float32)
    beta = 0.1 * jax.random.normal(k_be, (C_OUT,), dtype=jnp.float32)

    # Produce A_hat directly as padded bf16 (fused bf16 production upstream).
    tm, tk, n_pad_m, n_pad_k = graph_block_tiles(N)
    a_pad = gcn_normalized_adjacency(edge_index, edge_weight, N,
                                     pad_rows=n_pad_m, pad_cols=n_pad_k)

    out = graph_block_pallas(a_pad, x, weight, bias, gamma, beta)
    out = jax.block_until_ready(out)

    # Reference with the kernel's quantized MXU operands (bf16 A_hat, bf16 XW)
    # but full-f32 math; the reference keeps the conv bias while the kernel
    # drops it -- training-mode BN must cancel it exactly.
    a_q = a_pad[:N, :N].astype(jnp.float32)
    xw_q = jnp.dot(x, weight, precision=lax.Precision.HIGHEST)
    xw_q = xw_q.astype(jnp.bfloat16).astype(jnp.float32)
    ref = reference_graph_block(a_q, xw_q, bias, gamma.reshape(1, -1),
                                beta.reshape(1, -1))

    assert out.shape == (N, C_OUT)
    assert bool(jnp.all(jnp.isfinite(out)))
    assert jnp.allclose(out, ref, atol=2e-3, rtol=2e-3), float(
        jnp.max(jnp.abs(out - ref)))

    print("KERNEL_OK")
</pallas_src>

<mosaic_0001>
module attributes {stable_mosaic.version = 11 : i64} {
  func.func @agg_stats_kernel(%arg0: i32, %arg1: i32, %arg2: memref<16x128xbf16, #tpu.memory_space<vmem>>, %arg3: memref<128x128xbf16, #tpu.memory_space<vmem>>, %arg4: memref<16x128xf32, #tpu.memory_space<vmem>>, %arg5: memref<8x128xf32, #tpu.memory_space<vmem>>) attributes {dimension_semantics = [#tpu.dimension_semantics<parallel>, #tpu.dimension_semantics<arbitrary>], iteration_bounds = array<i64: 1, 1>, scalar_prefetch = 0 : i64, scratch_operands = 0 : i64, tpu.core_type = #tpu.core_type<tc>, window_params = [{transform_indices = @transform_0, window_bounds = array<i64: 16, 128>}, {transform_indices = @transform_1, window_bounds = array<i64: 128, 128>}, {transform_indices = @transform_2, window_bounds = array<i64: 16, 128>}, {transform_indices = @transform_3, window_bounds = array<i64: 8, 128>}]} {
    %c0_i32 = arith.constant 0 : i32
    %0 = arith.cmpi eq, %arg1, %c0_i32 : i32
    %1 = arith.extui %0 : i1 to i32
    %c0_i32_0 = arith.constant 0 : i32
    %2 = arith.cmpi ne, %1, %c0_i32_0 : i32
    scf.if %2 {
      %cst_10 = arith.constant 0.000000e+00 : f32
      %12 = vector.broadcast %cst_10 : f32 to vector<16x128xf32>
      %c0_11 = arith.constant 0 : index
      %c0_12 = arith.constant 0 : index
      %13 = vector.load %arg4[%c0_11, %c0_12] : memref<16x128xf32, #tpu.memory_space<vmem>>, vector<16x128xf32>
      tpu.vector_store %arg4[%c0_11, %c0_12], %12 {strides = array<i32>} : memref<16x128xf32, #tpu.memory_space<vmem>>, vector<16x128xf32>,
    } else {
    }
    %c0 = arith.constant 0 : index
    %c0_1 = arith.constant 0 : index
    %3 = vector.load %arg4[%c0, %c0_1] : memref<16x128xf32, #tpu.memory_space<vmem>>, vector<16x128xf32>
    %c0_2 = arith.constant 0 : index
    %c0_3 = arith.constant 0 : index
    %4 = vector.load %arg2[%c0_2, %c0_3] : memref<16x128xbf16, #tpu.memory_space<vmem>>, vector<16x128xbf16>
    %c0_4 = arith.constant 0 : index
    %c0_5 = arith.constant 0 : index
    %5 = vector.load %arg3[%c0_4, %c0_5] : memref<128x128xbf16, #tpu.memory_space<vmem>>, vector<128x128xbf16>
    %cst = arith.constant dense<0.000000e+00> : vector<16x128xf32>
    %6 = tpu.matmul %4, %5, %cst {dimension_numbers = #tpu.dot_dimension_numbers<[1], [0], [0], [1], [0, 0, 1, 1], [], []>} : vector<16x128xbf16>, vector<128x128xbf16>, vector<16x128xf32> -> vector<16x128xf32>
    %7 = arith.addf %3, %6 : vector<16x128xf32>
    %c0_6 = arith.constant 0 : index
    %c0_7 = arith.constant 0 : index
    %8 = vector.load %arg4[%c0_6, %c0_7] : memref<16x128xf32, #tpu.memory_space<vmem>>, vector<16x128xf32>
    tpu.vector_store %arg4[%c0_6, %c0_7], %7 {strides = array<i32>} : memref<16x128xf32, #tpu.memory_space<vmem>>, vector<16x128xf32>,
    %c0_i32_8 = arith.constant 0 : i32
    %9 = arith.cmpi eq, %arg1, %c0_i32_8 : i32
    %10 = arith.extui %9 : i1 to i32
    %c0_i32_9 = arith.constant 0 : i32
    %11 = arith.cmpi ne, %10, %c0_i32_9 : i32
    scf.if %11 {
      %c0_10 = arith.constant 0 : index
      %c0_11 = arith.constant 0 : index
      %12 = vector.load %arg4[%c0_10, %c0_11] : memref<16x128xf32, #tpu.memory_space<vmem>>, vector<16x128xf32>
      %13 = tpu.iota {dimensions = array<i32: 0>} : vector<16x1xi32>
      %c16_i32 = arith.constant 16 : i32
      %14 = arith.muli %arg0, %c16_i32 : i32
      %15 = vector.broadcast %14 : i32 to vector<16x1xi32>
      %16 = arith.addi %15, %13 : vector<16x1xi32>
      %c16_i32_12 = arith.constant 16 : i32
      %17 = vector.broadcast %c16_i32_12 : i32 to vector<16x1xi32>
      %18 = arith.cmpi slt, %16, %17 : vector<16x1xi32>
      %c16_i32_13 = arith.constant 16 : i32
      %19 = arith.muli %arg0, %c16_i32_13 : i32
      %c16_i32_14 = arith.constant 16 : i32
      %20 = arith.subi %c16_i32_14, %19 : i32
      %c16_i32_15 = arith.constant 16 : i32
      %21 = arith.minsi %20, %c16_i32_15 : i32
      %22 = arith.sitofp %21 : i32 to f32
      %cst_16 = arith.constant dense<0.000000e+00> : vector<128xf32>
      %23 = vector.multi_reduction <add>, %12, %cst_16 [0] : vector<16x128xf32> to vector<128xf32>
      %24 = vector.shape_cast %23 : vector<128xf32> to vector<1x128xf32>
      %25 = vector.broadcast %22 : f32 to vector<1x128xf32>
      %26 = arith.divf %24, %25 : vector<1x128xf32>
      %27 = vector.broadcast %26 : vector<1x128xf32> to vector<16x128xf32>
      %28 = arith.subf %12, %27 : vector<16x128xf32>
      %cst_17 = arith.constant 0.000000e+00 : f32
      %29 = vector.shape_cast %18 : vector<16x1xi1> to vector<16x1xi1>
      %30 = vector.broadcast %29 : vector<16x1xi1> to vector<16x128xi1>
      %31 = vector.broadcast %cst_17 : f32 to vector<16x128xf32>
      %32 = arith.select %30, %28, %31 : vector<16x128xi1>, vector<16x128xf32>
      %33 = arith.mulf %32, %32 : vector<16x128xf32>
      %cst_18 = arith.constant dense<0.000000e+00> : vector<128xf32>
      %34 = vector.multi_reduction <add>, %33, %cst_18 [0] : vector<16x128xf32> to vector<128xf32>
      %35 = vector.shape_cast %34 : vector<128xf32> to vector<1x128xf32>
      %36 = tpu.iota {dimensions = array<i32: 0>} : vector<8x128xi32>
      %c0_i32_19 = arith.constant 0 : i32
      %37 = vector.broadcast %c0_i32_19 : i32 to vector<8x128xi32>
      %38 = arith.cmpi eq, %36, %37 : vector<8x128xi32>
      %cst_20 = arith.constant 0.000000e+00 : f32
      %39 = vector.shape_cast %24 : vector<1x128xf32> to vector<1x128xf32>
      %40 = vector.broadcast %39 : vector<1x128xf32> to vector<8x128xf32>
      %41 = vector.broadcast %cst_20 : f32 to vector<8x128xf32>
      %42 = arith.select %38, %40, %41 : vector<8x128xi1>, vector<8x128xf32>
      %c1_i32 = arith.constant 1 : i32
      %43 = vector.broadcast %c1_i32 : i32 to vector<8x128xi32>
      %44 = arith.cmpi eq, %36, %43 : vector<8x128xi32>
      %cst_21 = arith.constant 0.000000e+00 : f32
      %45 = vector.shape_cast %35 : vector<1x128xf32> to vector<1x128xf32>
      %46 = vector.broadcast %45 : vector<1x128xf32> to vector<8x128xf32>
      %47 = vector.broadcast %cst_21 : f32 to vector<8x128xf32>
      %48 = arith.select %44, %46, %47 : vector<8x128xi1>, vector<8x128xf32>
      %49 = arith.addf %42, %48 : vector<8x128xf32>
      %c0_22 = arith.constant 0 : index
      %c0_23 = arith.constant 0 : index
      %50 = vector.load %arg5[%c0_22, %c0_23] : memref<8x128xf32, #tpu.memory_space<vmem>>, vector<8x128xf32>
      tpu.vector_store %arg5[%c0_22, %c0_23], %49 {strides = array<i32>} : memref<8x128xf32, #tpu.memory_space<vmem>>, vector<8x128xf32>,
    } else {
    }
    return
  }
  func.func @transform_0(%arg0: i32, %arg1: i32) -> (i32, i32) {
    %c0_i32 = arith.constant 0 : i32
    return %arg0, %arg1 : i32, i32
  }
  func.func @transform_1(%arg0: i32, %arg1: i32) -> (i32, i32) {
    %c0_i32 = arith.constant 0 : i32
    %c0_i32_0 = arith.constant 0 : i32
    return %arg1, %c0_i32 : i32, i32
  }
  func.func @transform_2(%arg0: i32, %arg1: i32) -> (i32, i32) {
    %c0_i32 = arith.constant 0 : i32
    %c0_i32_0 = arith.constant 0 : i32
    return %arg0, %c0_i32 : i32, i32
  }
  func.func @transform_3(%arg0: i32, %arg1: i32) -> (i32, i32) {
    %c0_i32 = arith.constant 0 : i32
    %c0_i32_0 = arith.constant 0 : i32
    return %arg0, %c0_i32 : i32, i32
  }
}

</mosaic_0001>

<llo_original>
// kernel: tpu_custom_call.1
$region0: #{tpu_custom_call.1}
  #allocation0 [shape = 'u32[]', space=smem, size = 0x4, offset = 0x4, fixed_abs, tag = 'smem constant byte address 0x4 - core index']
  #allocation1 [shape = 'u32[72,128]{1,0:T(1,128)}', space=vmem, size = 0x9000, scoped, tag = 'internal scratch']
  %s0 = inlined_call_operand.hbm [shape: bf16[16,128], index: 0, kind: input, shape index: {}]
  %s1 = inlined_call_operand.hbm [shape: bf16[128,128], index: 1, kind: input, shape index: {}]
  %s2 = inlined_call_operand.hbm [shape: f32[16,128], index: 2, kind: output, shape index: {0}]
  %s3 = inlined_call_operand.hbm [shape: f32[8,128], index: 3, kind: output, shape index: {1}]
  %4 = xla_tuple %s2, %s3
  %s5 = sld [smem:[#allocation0]]
  $region42: #{tpu_custom_call.1} parent=0
    _
  %s7 = ssub.s32 1, %s5
  %s8 = scalar_select 0, %s7, %s5
  $region1: #{tpu_custom_call.1} parent=0
    #allocation2 [shape = 'u8[4096]{0}', space=vmem, size = 0x1000, scoped, tag = 'input window, operand 0, single buffered']
    #allocation3 [shape = 's32[1]{0}', space=sflag, size = 0x4, scoped, tag = 'scoped memory for tpu_custom_call.1']
    #allocation4 [shape = 's32[1]{0}', space=sflag, size = 0x4, scoped, tag = 'scoped memory for tpu_custom_call.1']
    #allocation5 [shape = 'u8[32768]{0}', space=vmem, size = 0x8000, scoped, tag = 'input window, operand 1, single buffered']
    #allocation6 [shape = 's32[1]{0}', space=sflag, size = 0x4, scoped, tag = 'scoped memory for tpu_custom_call.1']
    #allocation7 [shape = 'u8[8192]{0}', space=vmem, size = 0x2000, scoped, tag = 'output window, operand 0, single buffered']
    #allocation8 [shape = 'u8[4096]{0}', space=vmem, size = 0x1000, scoped, tag = 'output window, operand 1, single buffered']
    #allocation9 [shape = 's32[1]{0}', space=sflag, size = 0x4, scoped, tag = 'scoped memory for tpu_custom_call.1']
    %9 = vsyncpa [#allocation3], 0
    %10 = vsyncpa [#allocation6], 0
    %11 = vsyncpa [#allocation4], 0
    %12 = vsyncpa [#allocation9], 0
    // Predicated region
    $region2: #{tpu_custom_call.1} parent=1 // pred_check
      _
    $region3: #{tpu_custom_call.1} parent=1 // pred_check_branch
      %14 = sbr.rel (0) target = $region5
    $region4: #{tpu_custom_call.1} parent=1 // pred_region
      %16 = vsyncadd [#allocation3], 0
      %s17 = sshll.u32 %s0, 4
      %s18 = int_to_ptr.hbm [resolvable:$true] %s17
      %s19 = sshll.u32 [#allocation2], 4
      %s20 = int_to_ptr.vmem [resolvable:$true] %s19
      %25 = dma.hbm_to_vmem [thread:$0]  %s18, 128, %s20, [#allocation3], 64, 64, 4
    $region5: #{tpu_custom_call.1} parent=1 // pred_fallthru
      _
    // Predicated region
    $region6: #{tpu_custom_call.1} parent=1 // pred_check
      _
    $region7: #{tpu_custom_call.1} parent=1 // pred_check_branch
      %27 = sbr.rel (0) target = $region9
    $region8: #{tpu_custom_call.1} parent=1 // pred_region
      %29 = vsyncadd [#allocation6], 0
      %s30 = sshll.u32 %s1, 4
      %s31 = int_to_ptr.hbm [resolvable:$true] %s30
      %s32 = sshll.u32 [#allocation5], 4
      %s33 = int_to_ptr.vmem [resolvable:$true] %s32
      %38 = dma.hbm_to_vmem [thread:$0]  %s31, 1024, %s33, [#allocation6], 64, 64, 4
    $region9: #{tpu_custom_call.1} parent=1 // pred_fallthru
      _
    // Predicated region
    $region10: #{tpu_custom_call.1} parent=1 // pred_check
      _
    $region11: #{tpu_custom_call.1} parent=1 // pred_check_branch
      %40 = sbr.rel (0) target = $region13
    $region12: #{tpu_custom_call.1} parent=1 // pred_region
      %42 = dma.done [#allocation3], 128
    $region13: #{tpu_custom_call.1} parent=1 // pred_fallthru
      _
    // Predicated region
    $region14: #{tpu_custom_call.1} parent=1 // pred_check
      _
    $region15: #{tpu_custom_call.1} parent=1 // pred_check_branch
      %44 = sbr.rel (0) target = $region17
    $region16: #{tpu_custom_call.1} parent=1 // pred_region
      %46 = dma.done [#allocation6], 1024
    $region17: #{tpu_custom_call.1} parent=1 // pred_fallthru
      _
    %p47 = scmp.eq.s32.totalorder 0, 0
    // Predicated region
    $region18: #{tpu_custom_call.1} parent=1 // pred_check
      %p48 = pneg %p47
    $region19: #{tpu_custom_call.1} parent=1 // pred_check_branch
      %50 = sbr.rel (%p48) target = $region21
    $region20: #{tpu_custom_call.1} parent=1 // pred_region
      %51 = vst [vmem:[#allocation7] sm:$0xff] 0.0
      %52 = vst [vmem:[#allocation7 + $0x8] sm:$0xff] 0.0
    $region21: #{tpu_custom_call.1} parent=1 // pred_fallthru
      _
    %v53 = vld [vmem:[#allocation7] sm:$0xff]
    %v54 = vld [vmem:[#allocation7 + $0x8] sm:$0xff]
    %v55 = vld [vmem:[#allocation2] sm:$0xf]
    %v56 = vld [vmem:[#allocation2 + $0x4] sm:$0xf]
    %v57 = vld [vmem:[#allocation5] sm:$0xf]
    %v58 = vld [vmem:[#allocation5 + $0x4] sm:$0xf]
    %v59 = vld [vmem:[#allocation5 + $0x8] sm:$0xf]
    %v60 = vld [vmem:[#allocation5 + $0xc] sm:$0xf]
    %v61 = vld [vmem:[#allocation5 + $0x10] sm:$0xf]
    %v62 = vld [vmem:[#allocation5 + $0x14] sm:$0xf]
    %v63 = vld [vmem:[#allocation5 + $0x18] sm:$0xf]
    %v64 = vld [vmem:[#allocation5 + $0x1c] sm:$0xf]
    %v65 = vld [vmem:[#allocation5 + $0x20] sm:$0xf]
    %v66 = vld [vmem:[#allocation5 + $0x24] sm:$0xf]
    %v67 = vld [vmem:[#allocation5 + $0x28] sm:$0xf]
    %v68 = vld [vmem:[#allocation5 + $0x2c] sm:$0xf]
    %v69 = vld [vmem:[#allocation5 + $0x30] sm:$0xf]
    %v70 = vld [vmem:[#allocation5 + $0x34] sm:$0xf]
    %v71 = vld [vmem:[#allocation5 + $0x38] sm:$0xf]
    %v72 = vld [vmem:[#allocation5 + $0x3c] sm:$0xf]
    %v75 = vunpack.c.l.b16 %v55
    %v76 = vunpack.c.l.b16 %v56
    %v77 = vpack.c.b16 %v76, %v75
    %v95 = vunpack.c.l.b16 %v57
    %v96 = vunpack.c.l.b16 %v58
    %v97 = vunpack.c.l.b16 %v59
    %v98 = vunpack.c.l.b16 %v60
    %v99 = vunpack.c.l.b16 %v61
    %v100 = vunpack.c.l.b16 %v62
    %v101 = vunpack.c.l.b16 %v63
    %v102 = vunpack.c.l.b16 %v64
    %v103 = vunpack.c.l.b16 %v65
    %v104 = vunpack.c.l.b16 %v66
    %v105 = vunpack.c.l.b16 %v67
    %v106 = vunpack.c.l.b16 %v68
    %v107 = vunpack.c.l.b16 %v69
    %v108 = vunpack.c.l.b16 %v70
    %v109 = vunpack.c.l.b16 %v71
    %v110 = vunpack.c.l.b16 %v72
    %v111 = vpack.c.b16 %v96, %v95
    %v112 = vpack.c.b16 %v98, %v97
    %v113 = vpack.c.b16 %v100, %v99
    %v114 = vpack.c.b16 %v102, %v101
    %v115 = vpack.c.b16 %v104, %v103
    %v116 = vpack.c.b16 %v106, %v105
    %v117 = vpack.c.b16 %v108, %v107
    %v118 = vpack.c.b16 %v110, %v109
    %127 = vmatpush.bf16.msra.mxu0 %v118
    %128 = vmatpush.bf16.msra.mxu0 %v117
    %129 = vmatpush.bf16.msra.mxu0 %v116
    %130 = vmatpush.bf16.msra.mxu0 %v115
    %131 = vmatpush.bf16.msra.mxu0 %v114
    %132 = vmatpush.bf16.msra.mxu0 %v113
    %133 = vmatpush.bf16.msra.mxu0 %v112
    %134 = vmatpush.bf16.msra.mxu0 %v111
    %135 = vmatmul.bf16.gmra.mxu0 %v77
    %v136 = vpop.f32.mrf.mxu0
    %v137 = vadd.f32 0.0, %v136
    %v138 = vpop.f32.mrf.mxu0
    %v139 = vadd.f32 0.0, %v138
    %140 = vdwg.mxu0
    %v141 = vadd.f32 %v53, %v137
    %v142 = vadd.f32 %v54, %v139
    %143 = vst [vmem:[#allocation7] sm:$0xff] %v141
    %144 = vst [vmem:[#allocation7 + $0x8] sm:$0xff] %v142
    // Predicated region
    $region22: #{tpu_custom_call.1} parent=1 // pred_check
      %p145 = pneg %p47
    $region23: #{tpu_custom_call.1} parent=1 // pred_check_branch
      %147 = sbr.rel (%p145) target = $region25
    $region24: #{tpu_custom_call.1} parent=1 // pred_region
      %v148 = vld [vmem:[#allocation7] sm:$0xff]
      %v149 = vld [vmem:[#allocation7 + $0x8] sm:$0xff]
      %v150 = vlaneseq
      %v151 = vshrl.u32 %v150, 7
      %v152 = vadd.s32 %v151, 8
      %s153 = smul.u32 0, 16
      %v154 = vstv %s153
      %v155 = vadd.s32 %v154, %v151
      %v156 = vadd.s32 %v154, %v152
      %vm157 = vcmp.lt.s32.totalorder %v155, 16
      %vm158 = vcmp.lt.s32.totalorder %v156, 16
      %s159 = ssub.s32 16, %s153
      %p160 = scmp.lt.s32.totalorder %s159, 16
      %s161 = scalar_select %p160, %s159, 16
      %s162 = scvt.s32.f32 %s161
      %v163 = vadd.f32 %v148, %v149
      %v164 = vrot.slane %v163, 4
      %v165 = vadd.f32 %v163, %v164
      %v166 = vrot.slane %v165, 2
      %v167 = vadd.f32 %v165, %v166
      %v168 = vrot.slane %v167, 1
      %v169 = vadd.f32 %v167, %v168
      %v170 = vstv %s162
      %v171 = vrcp.pop %v170
      %v172 = vmul.f32 %v170, %v171
      %v173 = vsub.f32 1.0, %v172
      %v174 = vmul.f32 %v171, %v173
      %v175 = vadd.f32 %v171, %v174
      %vm176 = vweird.f32 %v170
      %vm177 = vweird.f32 %v171
      %vm178 = vmor %vm176, %vm177
      %v179 = vsel %vm178, %v171, %v175
      %v180 = vand.u32 2147483647, %v170
      %vm181 = vcmp.eq.f32.partialorder %v180, 8.507059e+37
      %v182 = vand.u32 %v170, 2147483648
      %v183 = vor.u32 1.1754944e-38, %v182
      %v184 = vsel %vm181, %v183, %v179
      %v185 = vmul.f32 %v169, %v184
      %v186 = vsub.f32 %v148, %v185
      %v187 = vsub.f32 %v149, %v185
      %v188 = vsel %vm157, 1, 0
      %v189 = vsel %vm158, 1, 0
      %vm190 = vcmp.eq.s32.totalorder %v188, 1
      %vm191 = vcmp.eq.s32.totalorder %v189, 1
      %v192 = vsel %vm190, %v186, 0.0
      %v193 = vsel %vm191, %v187, 0.0
      %v194 = vmul.f32 %v192, %v192
      %v195 = vmul.f32 %v193, %v193
      %v196 = vadd.f32 %v194, %v195
      %v197 = vrot.slane %v196, 4
      %v198 = vadd.f32 %v196, %v197
      %v199 = vrot.slane %v198, 2
      %v200 = vadd.f32 %v198, %v199
      %v201 = vrot.slane %v200, 1
      %v202 = vadd.f32 %v200, %v201
      %vm203 = vcmp.eq.s32.totalorder %v151, 0
      %v204 = vsel %vm203, %v169, 0.0
      %vm205 = vcmp.eq.s32.totalorder %v151, 1
      %v206 = vsel %vm205, %v202, 0.0
      %v207 = vadd.f32 %v204, %v206
      %208 = vst [vmem:[#allocation8] sm:$0xff] %v207
    $region25: #{tpu_custom_call.1} parent=1 // pred_fallthru
      _
    // Predicated region
    $region26: #{tpu_custom_call.1} parent=1 // pred_check
      _
    $region27: #{tpu_custom_call.1} parent=1 // pred_check_branch
      %210 = sbr.rel (0) target = $region29
    $region28: #{tpu_custom_call.1} parent=1 // pred_region
      %212 = vsyncadd [#allocation4], 0
      %s213 = sshll.u32 [#allocation7], 4
      %s214 = int_to_ptr.vmem [resolvable:$true] %s213
      %s215 = sshll.u32 %s2, 4
      %s216 = int_to_ptr.hbm [resolvable:$true] %s215
      %221 = dma.vmem_to_hbm [thread:$0]  %s214, 256, %s216, [#allocation4], 128, 128, 8
    $region29: #{tpu_custom_call.1} parent=1 // pred_fallthru
      _
    // Predicated region
    $region30: #{tpu_custom_call.1} parent=1 // pred_check
      _
    $region31: #{tpu_custom_call.1} parent=1 // pred_check_branch
      %223 = sbr.rel (0) target = $region33
    $region32: #{tpu_custom_call.1} parent=1 // pred_region
      %225 = vsyncadd [#allocation9], 0
      %s227 = sshll.u32 [#allocation8], 4
      %s228 = int_to_ptr.vmem [resolvable:$true] %s227
      %s229 = sshll.u32 %s3, 4
      %s230 = int_to_ptr.hbm [resolvable:$true] %s229
      %232 = dma.vmem_to_hbm [thread:$0]  %s228, 128, %s230, [#allocation9]
    $region33: #{tpu_custom_call.1} parent=1 // pred_fallthru
      _
    // Predicated region
    $region34: #{tpu_custom_call.1} parent=1 // pred_check
      _
    $region35: #{tpu_custom_call.1} parent=1 // pred_check_branch
      %234 = sbr.rel (0) target = $region37
    $region36: #{tpu_custom_call.1} parent=1 // pred_region
      %236 = dma.done [#allocation4], 256
    $region37: #{tpu_custom_call.1} parent=1 // pred_fallthru
      _
    // Predicated region
    $region38: #{tpu_custom_call.1} parent=1 // pred_check
      _
    $region39: #{tpu_custom_call.1} parent=1 // pred_check_branch
      %238 = sbr.rel (0) target = $region41
    $region40: #{tpu_custom_call.1} parent=1 // pred_region
      %240 = dma.done [#allocation9], 128
    $region41: #{tpu_custom_call.1} parent=1 // pred_fallthru
      _
    %241 = vsyncpa [#allocation3], 1
    %242 = vsyncpa [#allocation6], 1
    %243 = vsyncpa [#allocation4], 1
    %244 = vsyncpa [#allocation9], 1

</llo_original>
